<compile_context>
chip_gen: v7x
topology: tpu7x:2x2x1
jax: 0.10.0
libtpu: 0.0.40
codegen_flags: <defaults>
</compile_context>

<pallas_src>
import jax
import jax.numpy as jnp
from jax.experimental import pallas as pl
from jax.experimental.pallas import tpu as pltpu


def _round_up(x: int, m: int) -> int:
    return ((x + m - 1) // m) * m


def _make_linear_kernel(compute_dtype):
    def kernel(x_ref, w_ref, g_ref, o_ref, acc_ref):
        # k == 0: zero the accumulator for this (i, j) output tile.
        @pl.when(pl.program_id(2) == 0)
        def _init():
            acc_ref[...] = jnp.zeros_like(acc_ref)

        # Gate in f32 on the VPU (v5e has no bf16 VALU), then feed the MXU.
        gated = w_ref[...] * g_ref[...]
        acc_ref[...] += jnp.dot(
            x_ref[...].astype(compute_dtype),
            gated.astype(compute_dtype),
            preferred_element_type=jnp.float32,
        )

        # Last k step: write the f32 accumulator to the lane-dense output tile.
        @pl.when(pl.program_id(2) == pl.num_programs(2) - 1)
        def _store():
            o_ref[...] = acc_ref[...].astype(o_ref.dtype)

    return kernel


def linear_layer_forward(x, W, G, feature_out=1, *,
                         tm=256, tn=256, tk=512, use_bf16=False):
    """x: (N, K), W: (K, M_base*feature_out), G: (K, M_base)  ->  (N, M)."""
    N, K = x.shape
    Kg, M_base = G.shape
    assert K == Kg, "x and G disagree on K"
    M = M_base * feature_out
    assert W.shape == (K, M), "W must be (K, M_base * feature_out)"

    # Tile sizes: clamp to the (padded) problem, keep TPU layout alignment
    # (second-to-last dims multiples of 8, last dims multiples of 128).
    tm = min(tm, _round_up(N, 8))
    tk = min(tk, _round_up(K, 128))
    tn = min(tn, _round_up(M_base, 128))

    N_pad = _round_up(N, tm)
    K_pad = _round_up(K, tk)
    Mb_pad = _round_up(M_base, tn)       # padded width of ONE G repetition
    M_pad = Mb_pad * feature_out
    n_gb = Mb_pad // tn                  # G column-blocks; j wraps onto them

    # Zero-pad. K padding contributes 0 to the dot product; N / M padding is
    # sliced away after the kernel. W is padded per repetition so its padded
    # column layout matches concat([G_pad]*feature_out, axis=1).
    x_p = jnp.pad(x, ((0, N_pad - N), (0, K_pad - K)))
    g_p = jnp.pad(G, ((0, K_pad - K), (0, Mb_pad - M_base)))
    w_p = jnp.pad(
        W.reshape(K, feature_out, M_base),
        ((0, K_pad - K), (0, 0), (0, Mb_pad - M_base)),
    ).reshape(K_pad, M_pad)

    grid = (N_pad // tm, M_pad // tn, K_pad // tk)

    in_specs = [
        pl.BlockSpec((tm, tk), lambda i, j, k: (i, k)),          # x tile
        pl.BlockSpec((tk, tn), lambda i, j, k: (k, j)),          # W tile
        pl.BlockSpec((tk, tn), lambda i, j, k: (k, j % n_gb)),   # un-tiled G wraps
    ]
    out_specs = pl.BlockSpec((tm, tn), lambda i, j, k: (i, j))

    # Advisory cost estimate for XLA's scheduler.
    flops = 2.0 * N_pad * K_pad * M_pad + float(K_pad * M_pad)   # matmul + gate
    bytes_accessed = 4 * (
        N_pad * K_pad                                            # x
        + (N_pad // tm) * K_pad * M_pad                          # W (per i-tile)
        + (N_pad // tm) * K_pad * Mb_pad                         # G (per i-tile)
        + N_pad * M_pad                                          # out
    )
    cost = pl.CostEstimate(flops=int(flops), transcendentals=0,
                           bytes_accessed=int(bytes_accessed))

    # Explicit scoped-VMEM budget: double-buffered tiles + accumulator, with
    # headroom, capped well below v7x's 64 MiB physical VMEM.
    tile_bytes = 4 * (tm * tk + 2 * tk * tn + tm * tn)
    vmem_need = 2 * tile_bytes + 4 * tm * tn
    vmem_limit = int(min(48 * 1024 * 1024, max(32 * 1024 * 1024, 2 * vmem_need)))

    out_p = pl.pallas_call(
        _make_linear_kernel(jnp.bfloat16 if use_bf16 else jnp.float32),
        out_shape=jax.ShapeDtypeStruct((N_pad, M_pad), jnp.float32),
        grid_spec=pltpu.PrefetchScalarGridSpec(
            num_scalar_prefetch=0,
            grid=grid,
            in_specs=in_specs,
            out_specs=out_specs,
            scratch_shapes=[pltpu.VMEM((tm, tn), jnp.float32)],
        ),
        compiler_params=pltpu.CompilerParams(
            dimension_semantics=("parallel", "parallel", "arbitrary"),
            vmem_limit_bytes=vmem_limit,
        ),
        cost_estimate=cost,
    )(x_p, w_p, g_p)

    # Drop padding: padded layout is (N_pad, feature_out, Mb_pad).
    out = out_p.reshape(N_pad, feature_out, Mb_pad)[:N, :, :M_base]
    return out.reshape(N, M)


class LinearLayerPallas:
    """JAX mirror of the PyTorch Linear_layer module (no G_tiled materialized)."""

    def __init__(self, G, feature_out=1):
        self.G = jnp.asarray(G)                      # un-tiled (K, M_base)
        self.feature_out = int(feature_out)
        K, M_base = self.G.shape
        # nn.Parameter(torch.ones_like(concat([G]*feature_out, dim=1)))
        self.W = jnp.ones((K, M_base * self.feature_out), dtype=self.G.dtype)

    def __call__(self, x_input, *, use_bf16=False):
        return linear_layer_forward(x_input, self.W, self.G, self.feature_out,
                                    use_bf16=use_bf16)


if __name__ == "__main__":
    key = jax.random.PRNGKey(0)
    k_g, k_x = jax.random.split(key)

    # Small shapes consistent with torch.mm: x (N, K), G (K, M_base).
    N, K, M_base, feature_out = 8, 32, 16, 2

    G = jax.random.normal(k_g, (K, M_base), dtype=jnp.float32)
    x = jax.random.normal(k_x, (N, K), dtype=jnp.float32)

    layer = LinearLayerPallas(G, feature_out=feature_out)

    # f32 MXU path: must match the reference tightly.
    out = jax.block_until_ready(layer(x))
    G_tiled = jnp.concatenate([G] * feature_out, axis=1)
    ref = x @ (layer.W * G_tiled)
    assert out.shape == (N, M_base * feature_out)
    assert jnp.allclose(out, ref, atol=1e-4, rtol=1e-4)

    # Optional bf16 MXU path (f32 accumulation): looser tolerance.
    out_bf16 = jax.block_until_ready(layer(x, use_bf16=True))
    assert jnp.allclose(out_bf16, ref, atol=0.3, rtol=5e-2)

    print("KERNEL_OK")
</pallas_src>

<mosaic_0001>
module attributes {stable_mosaic.version = 11 : i64} {
  func.func @kernel(%arg0: i32, %arg1: i32, %arg2: i32, %arg3: memref<8x128xf32, #tpu.memory_space<vmem>>, %arg4: memref<128x128xf32, #tpu.memory_space<vmem>>, %arg5: memref<128x128xf32, #tpu.memory_space<vmem>>, %arg6: memref<8x128xf32, #tpu.memory_space<vmem>>, %arg7: memref<8x128xf32, #tpu.memory_space<vmem>>) attributes {dimension_semantics = [#tpu.dimension_semantics<parallel>, #tpu.dimension_semantics<parallel>, #tpu.dimension_semantics<arbitrary>], iteration_bounds = array<i64: 1, 2, 1>, scalar_prefetch = 0 : i64, scratch_operands = 1 : i64, tpu.core_type = #tpu.core_type<tc>, window_params = [{transform_indices = @transform_0, window_bounds = array<i64: 8, 128>}, {transform_indices = @transform_1, window_bounds = array<i64: 128, 128>}, {transform_indices = @transform_2, window_bounds = array<i64: 128, 128>}, {transform_indices = @transform_3, window_bounds = array<i64: 8, 128>}]} {
    %c0_i32 = arith.constant 0 : i32
    %0 = arith.cmpi eq, %arg2, %c0_i32 : i32
    %1 = arith.extui %0 : i1 to i32
    %c0_i32_0 = arith.constant 0 : i32
    %2 = arith.cmpi ne, %1, %c0_i32_0 : i32
    scf.if %2 {
      %cst_12 = arith.constant 0.000000e+00 : f32
      %14 = vector.broadcast %cst_12 : f32 to vector<8x128xf32>
      %c0_13 = arith.constant 0 : index
      %c0_14 = arith.constant 0 : index
      %15 = vector.load %arg7[%c0_13, %c0_14] : memref<8x128xf32, #tpu.memory_space<vmem>>, vector<8x128xf32>
      tpu.vector_store %arg7[%c0_13, %c0_14], %14 {strides = array<i32>} : memref<8x128xf32, #tpu.memory_space<vmem>>, vector<8x128xf32>,
    } else {
    }
    %c0 = arith.constant 0 : index
    %c0_1 = arith.constant 0 : index
    %3 = vector.load %arg4[%c0, %c0_1] : memref<128x128xf32, #tpu.memory_space<vmem>>, vector<128x128xf32>
    %c0_2 = arith.constant 0 : index
    %c0_3 = arith.constant 0 : index
    %4 = vector.load %arg5[%c0_2, %c0_3] : memref<128x128xf32, #tpu.memory_space<vmem>>, vector<128x128xf32>
    %5 = arith.mulf %3, %4 : vector<128x128xf32>
    %c0_4 = arith.constant 0 : index
    %c0_5 = arith.constant 0 : index
    %6 = vector.load %arg7[%c0_4, %c0_5] : memref<8x128xf32, #tpu.memory_space<vmem>>, vector<8x128xf32>
    %c0_6 = arith.constant 0 : index
    %c0_7 = arith.constant 0 : index
    %7 = vector.load %arg3[%c0_6, %c0_7] : memref<8x128xf32, #tpu.memory_space<vmem>>, vector<8x128xf32>
    %cst = arith.constant dense<0.000000e+00> : vector<8x128xf32>
    %8 = tpu.matmul %7, %5, %cst {dimension_numbers = #tpu.dot_dimension_numbers<[1], [0], [0], [1], [0, 0, 1, 1], [], []>} : vector<8x128xf32>, vector<128x128xf32>, vector<8x128xf32> -> vector<8x128xf32>
    %9 = arith.addf %6, %8 : vector<8x128xf32>
    %c0_8 = arith.constant 0 : index
    %c0_9 = arith.constant 0 : index
    %10 = vector.load %arg7[%c0_8, %c0_9] : memref<8x128xf32, #tpu.memory_space<vmem>>, vector<8x128xf32>
    tpu.vector_store %arg7[%c0_8, %c0_9], %9 {strides = array<i32>} : memref<8x128xf32, #tpu.memory_space<vmem>>, vector<8x128xf32>,
    %c0_i32_10 = arith.constant 0 : i32
    %11 = arith.cmpi eq, %arg2, %c0_i32_10 : i32
    %12 = arith.extui %11 : i1 to i32
    %c0_i32_11 = arith.constant 0 : i32
    %13 = arith.cmpi ne, %12, %c0_i32_11 : i32
    scf.if %13 {
      %c0_12 = arith.constant 0 : index
      %c0_13 = arith.constant 0 : index
      %14 = vector.load %arg7[%c0_12, %c0_13] : memref<8x128xf32, #tpu.memory_space<vmem>>, vector<8x128xf32>
      %c0_14 = arith.constant 0 : index
      %c0_15 = arith.constant 0 : index
      %15 = vector.load %arg6[%c0_14, %c0_15] : memref<8x128xf32, #tpu.memory_space<vmem>>, vector<8x128xf32>
      tpu.vector_store %arg6[%c0_14, %c0_15], %14 {strides = array<i32>} : memref<8x128xf32, #tpu.memory_space<vmem>>, vector<8x128xf32>,
    } else {
    }
    return
  }
  func.func @transform_0(%arg0: i32, %arg1: i32, %arg2: i32) -> (i32, i32) {
    %c0_i32 = arith.constant 0 : i32
    return %arg0, %arg2 : i32, i32
  }
  func.func @transform_1(%arg0: i32, %arg1: i32, %arg2: i32) -> (i32, i32) {
    %c0_i32 = arith.constant 0 : i32
    return %arg2, %arg1 : i32, i32
  }
  func.func @transform_2(%arg0: i32, %arg1: i32, %arg2: i32) -> (i32, i32) {
    %c1_i32 = arith.constant 1 : i32
    %c0_i32 = arith.constant 0 : i32
    %0 = arith.cmpi eq, %c1_i32, %c0_i32 : i32
    %c1_i32_0 = arith.constant 1 : i32
    %1 = arith.select %0, %c1_i32_0, %c1_i32 : i32
    %2 = arith.remsi %arg1, %1 : i32
    %c0_i32_1 = arith.constant 0 : i32
    %3 = arith.cmpi ne, %2, %c0_i32_1 : i32
    %c0_i32_2 = arith.constant 0 : i32
    %4 = arith.cmpi slt, %2, %c0_i32_2 : i32
    %c0_i32_3 = arith.constant 0 : i32
    %5 = arith.cmpi slt, %1, %c0_i32_3 : i32
    %6 = arith.xori %4, %5 : i1
    %7 = arith.andi %6, %3 : i1
    %8 = arith.addi %2, %1 : i32
    %9 = arith.select %7, %8, %2 : i32
    %c0_i32_4 = arith.constant 0 : i32
    return %arg2, %9 : i32, i32
  }
  func.func @transform_3(%arg0: i32, %arg1: i32, %arg2: i32) -> (i32, i32) {
    %c0_i32 = arith.constant 0 : i32
    return %arg0, %arg1 : i32, i32
  }
}

</mosaic_0001>

<llo_original>
// kernel: tpu_custom_call.1
$region0: #{tpu_custom_call.1}
  #allocation0 [shape = 'u32[]', space=smem, size = 0x4, offset = 0x4, fixed_abs, tag = 'smem constant byte address 0x4 - core index']
  #allocation1 [shape = 'u32[144,128]{1,0:T(1,128)}', space=vmem, size = 0x12000, scoped, tag = 'internal scratch']
  #allocation2 [shape = 'f32[8,128]{1,0:T(8,128)}', space=vmem, size = 0x1000, scoped, tag = 'scratch operand']
  %s0 = inlined_call_operand.hbm [shape: f32[8,128], index: 0, kind: input, shape index: {}]
  %s1 = inlined_call_operand.hbm [shape: f32[128,256], index: 1, kind: input, shape index: {}]
  %s2 = inlined_call_operand.hbm [shape: f32[128,128], index: 2, kind: input, shape index: {}]
  %s3 = inlined_call_operand.hbm [shape: f32[8,256], index: 3, kind: output, shape index: {}]
  %s4 = sld [smem:[#allocation0]]
  $region65: #{tpu_custom_call.1} parent=0
    _
  %s6 = ssub.s32 1, %s4
  %s7 = scalar_select 0, %s6, %s4
  $region1: #{tpu_custom_call.1} parent=0
    #allocation3 [shape = 'u8[4096]{0}', space=vmem, size = 0x1000, scoped, tag = 'input window, operand 0, single buffered']
    #allocation4 [shape = 's32[2]{0}', space=sflag, size = 0x8, scoped, tag = 'scoped memory for tpu_custom_call.1']
    #allocation5 [shape = 's32[2]{0}', space=sflag, size = 0x8, scoped, tag = 'scoped memory for tpu_custom_call.1']
    #allocation6 [shape = 'u8[131072]{0}', space=vmem, size = 0x20000, scoped, tag = 'input window, operand 1']
    #allocation7 [shape = 's32[2]{0}', space=sflag, size = 0x8, scoped, tag = 'scoped memory for tpu_custom_call.1']
    #allocation8 [shape = 'u8[65536]{0}', space=vmem, size = 0x10000, scoped, tag = 'input window, operand 2, single buffered']
    #allocation9 [shape = 'u8[8192]{0}', space=vmem, size = 0x2000, scoped, tag = 'output window, operand 0']
    %8 = vsyncpa [#allocation4], 0
    %9 = vsyncpa [#allocation7], 0
    %s10 = scalar_lea.sflag [#allocation7], 1
    %11 = vsyncpa %s10, 0
    %12 = vsyncpa [#allocation5], 0
    %s13 = scalar_lea.sflag [#allocation5], 1
    %14 = vsyncpa %s13, 0
    loop: start=0, step=1, limit=4
    $region2: #{tpu_custom_call.1} parent=1 // loop_pre_header
      _
    $region3: #{tpu_custom_call.1} parent=1 // loop_header
      %s16 = sphi 0, %s20
      %p17 = scmp.ge.s32.totalorder %s16, 4
      %s23 = sphi 0, %s42
      %s24 = sphi 0, %s38
      %s25 = sphi 0, %s34
      %s26 = sphi 0, %s23
      %s27 = sphi 0, %s24
      %s28 = sphi 0, %s25
      %s29 = sphi 0, %s26
      %s30 = sphi 0, %s27
      %s31 = sphi 0, %s28
      %s47 = sphi 0, %s49
      %s50 = sphi 0, %s47
      %s51 = sphi 0, %s50
      %s67 = sphi 0, %s51
      %s75 = sphi 0, %s77
      %s78 = sphi 0, %s75
      %s79 = sphi 0, %s78
      %s95 = sphi 0, %s79
      %s101 = sphi 0, %s103
      %s104 = sphi 0, %s101
      %s105 = sphi 0, %s104
      %s121 = sphi 0, %s105
      %s129 = sphi 0, %s131
      %s132 = sphi 0, %s129
      %s133 = sphi 0, %s132
      %s149 = sphi 0, %s133
    $region4: #{tpu_custom_call.1} parent=1 // loop_header_branch
      %19 = sbr.rel (%p17) target = $region8
    $region5: #{tpu_custom_call.1} parent=1 // loop_body
      %s21 = ssub.s32 %s16, 1
      %s22 = ssub.s32 %s16, 2
      %s32 = sadd.s32 1, %s25
      %p33 = scmp.ge.s32.totalorder %s32, 1
      %s34 = scalar_select %p33, 0, %s32
      %s35 = sadd.s32 1, %s24
      %s36 = scalar_select %p33, %s35, %s24
      %p37 = scmp.ge.s32.totalorder %s36, 2
      %s38 = scalar_select %p37, 0, %s36
      %s39 = sadd.s32 1, %s23
      %s40 = scalar_select %p37, %s39, %s23
      %p41 = scmp.ge.s32.totalorder %s40, 1
      %s42 = scalar_select %p41, 0, %s40
      %s43 = ssub.s32 %s23, %s42
      %s44 = ssub.s32 %s25, %s34
      %s45 = sor.u32 %s43, %s44
      %p46 = scmp.eq.s32.totalorder %s45, 0
      %s48 = sadd.s32 %s47, 1
      %s49 = scalar_select %p46, %s47, %s48
      %p52 = pneg %p46
      %p53 = scmp.eq.s32.totalorder %s16, 1
      %p54 = por %p52, %p53
      %p55 = scmp.ne.s32.totalorder %s47, %s50
      %p56 = scmp.eq.s32.totalorder %s16, 0
      %p57 = por %p55, %p56
      %p58 = scmp.ne.s32.totalorder %s47, %s50
      %p59 = scmp.eq.s32.totalorder %s21, 1
      %p60 = por %p58, %p59
      %p61 = scmp.ne.s32.totalorder %s50, %s51
      %p62 = scmp.eq.s32.totalorder %s21, 0
      %p63 = por %p61, %p62
      %p64 = scmp.ne.s32.totalorder %s50, %s51
      %p65 = scmp.eq.s32.totalorder %s22, 1
      %p66 = por %p64, %p65
      %p68 = scmp.ne.s32.totalorder %s51, %s67
      %p69 = scmp.eq.s32.totalorder %s22, 0
      %p70 = por %p68, %p69
      %s71 = ssub.s32 %s25, %s34
      %s72 = ssub.s32 %s24, %s38
      %s73 = sor.u32 %s71, %s72
      %p74 = scmp.eq.s32.totalorder %s73, 0
      %s76 = sadd.s32 %s75, 1
      %s77 = scalar_select %p74, %s75, %s76
      %p80 = pneg %p74
      %p81 = scmp.eq.s32.totalorder %s16, 1
      %p82 = por %p80, %p81
      %p83 = scmp.ne.s32.totalorder %s75, %s78
      %p84 = scmp.eq.s32.totalorder %s16, 0
      %p85 = por %p83, %p84
      %p86 = scmp.ne.s32.totalorder %s75, %s78
      %p87 = scmp.eq.s32.totalorder %s21, 1
      %p88 = por %p86, %p87
      %p89 = scmp.ne.s32.totalorder %s78, %s79
      %p90 = scmp.eq.s32.totalorder %s21, 0
      %p91 = por %p89, %p90
      %p92 = scmp.ne.s32.totalorder %s78, %s79
      %p93 = scmp.eq.s32.totalorder %s22, 1
      %p94 = por %p92, %p93
      %p96 = scmp.ne.s32.totalorder %s79, %s95
      %p97 = scmp.eq.s32.totalorder %s22, 0
      %p98 = por %p96, %p97
      %s99 = ssub.s32 %s25, %s34
      %p100 = scmp.eq.s32.totalorder %s99, 0
      %s102 = sadd.s32 %s101, 1
      %s103 = scalar_select %p100, %s101, %s102
      %p106 = pneg %p100
      %p107 = scmp.eq.s32.totalorder %s16, 1
      %p108 = por %p106, %p107
      %p109 = scmp.ne.s32.totalorder %s101, %s104
      %p110 = scmp.eq.s32.totalorder %s16, 0
      %p111 = por %p109, %p110
      %p112 = scmp.ne.s32.totalorder %s101, %s104
      %p113 = scmp.eq.s32.totalorder %s21, 1
      %p114 = por %p112, %p113
      %p115 = scmp.ne.s32.totalorder %s104, %s105
      %p116 = scmp.eq.s32.totalorder %s21, 0
      %p117 = por %p115, %p116
      %p118 = scmp.ne.s32.totalorder %s104, %s105
      %p119 = scmp.eq.s32.totalorder %s22, 1
      %p120 = por %p118, %p119
      %p122 = scmp.ne.s32.totalorder %s105, %s121
      %p123 = scmp.eq.s32.totalorder %s22, 0
      %p124 = por %p122, %p123
      %s125 = ssub.s32 %s23, %s42
      %s126 = ssub.s32 %s24, %s38
      %s127 = sor.u32 %s125, %s126
      %p128 = scmp.eq.s32.totalorder %s127, 0
      %s130 = sadd.s32 %s129, 1
      %s131 = scalar_select %p128, %s129, %s130
      %p134 = pneg %p128
      %p135 = scmp.eq.s32.totalorder %s16, 1
      %p136 = por %p134, %p135
      %p137 = scmp.ne.s32.totalorder %s129, %s132
      %p138 = scmp.eq.s32.totalorder %s16, 0
      %p139 = por %p137, %p138
      %p140 = scmp.ne.s32.totalorder %s129, %s132
      %p141 = scmp.eq.s32.totalorder %s21, 1
      %p142 = por %p140, %p141
      %p143 = scmp.ne.s32.totalorder %s132, %s133
      %p144 = scmp.eq.s32.totalorder %s21, 0
      %p145 = por %p143, %p144
      %p146 = scmp.ne.s32.totalorder %s132, %s133
      %p147 = scmp.eq.s32.totalorder %s22, 1
      %p148 = por %p146, %p147
      %p150 = scmp.ne.s32.totalorder %s133, %s149
      %p151 = scmp.eq.s32.totalorder %s22, 0
      %p152 = por %p150, %p151
      %p153 = scmp.le.s32.totalorder 1, %s16
      %p154 = scmp.lt.s32.totalorder %s16, 3
      %p155 = pnand %p153, %p154
      %p156 = pneg %p155
      // Predicated region
      $region9: #{tpu_custom_call.1} parent=5 // pred_check
        _
      $region10: #{tpu_custom_call.1} parent=5 // pred_check_branch
        %158 = sbr.rel (%p155) target = $region12
      $region11: #{tpu_custom_call.1} parent=5 // pred_region
        %s159 = ssub.s32 %s16, 1
        // Predicated region
        $region13: #{tpu_custom_call.1} parent=11 // pred_check
          %p160 = pneg %p63
        $region14: #{tpu_custom_call.1} parent=11 // pred_check_branch
          %162 = sbr.rel (%p160) target = $region16
        $region15: #{tpu_custom_call.1} parent=11 // pred_region
          %s164 = ssub.s32 128, 128
          %165 = vsyncadd [#allocation4], %s164
          %s166 = sadd.s32 %s28, %s26
          %s167 = smul.addr %s166, 128
          %s168 = scalar_lea.hbm %s0, %s167
          %s170 = sshll.u32 [#allocation3], 4
          %s171 = int_to_ptr.vmem [resolvable:$true] %s170
          %173 = dma.hbm_to_vmem [thread:$0]  %s168, 128, %s171, [#allocation4]
        $region16: #{tpu_custom_call.1} parent=11 // pred_fallthru
          _
        // Predicated region
        $region17: #{tpu_custom_call.1} parent=11 // pred_check
          %p174 = pneg %p117
        $region18: #{tpu_custom_call.1} parent=11 // pred_check_branch
          %176 = sbr.rel (%p174) target = $region20
        $region19: #{tpu_custom_call.1} parent=11 // pred_region
          %s177 = smul.u32 16, %s28
          %s179 = ssub.s32 2048, 2048
          %180 = vsyncadd [#allocation7], %s179
          %s181 = smul.addr %s177, 128
          %s182 = scalar_lea.hbm %s2, %s181
          %s183 = sshll.u32 [#allocation8], 4
          %s184 = int_to_ptr.vmem [resolvable:$true] %s183
          %189 = dma.hbm_to_vmem [thread:$0]  %s182, 2048, %s184, [#allocation7], 128, 128, 8
        $region20: #{tpu_custom_call.1} parent=11 // pred_fallthru
          _
      $region12: #{tpu_custom_call.1} parent=5 // pred_fallthru
        _
      %p190 = scmp.lt.s32.totalorder %s16, 2
      // Predicated region
      $region21: #{tpu_custom_call.1} parent=5 // pred_check
        %p191 = pneg %p190
      $region22: #{tpu_custom_call.1} parent=5 // pred_check_branch
        %193 = sbr.rel (%p191) target = $region24
      $region23: #{tpu_custom_call.1} parent=5 // pred_region
        // Predicated region
        $region25: #{tpu_custom_call.1} parent=23 // pred_check
          %p194 = pneg %p85
        $region26: #{tpu_custom_call.1} parent=23 // pred_check_branch
          %196 = sbr.rel (%p194) target = $region28
        $region27: #{tpu_custom_call.1} parent=23 // pred_region
          %s197 = sand.u32 %s16, 1
          %s198 = scalar_lea.sflag [#allocation7], %s197
          %s199 = sand.u32 %s75, 1
          %s200 = smul.addr %s199, 128
          %s201 = scalar_lea.vmem [#allocation6], %s200
          %s202 = smul.u32 16, %s25
          %s204 = ssub.s32 2048, 2048
          %205 = vsyncadd %s198, %s204
          %s206 = smul.addr %s202, 2
          %s207 = sadd.s32 %s24, %s206
          %s208 = smul.addr %s207, 128
          %s209 = scalar_lea.hbm %s1, %s208
          %s210 = sshll.u32 %s201, 4
          %s211 = int_to_ptr.vmem [resolvable:$true] %s210
          %216 = dma.hbm_to_vmem [thread:$0]  %s209, 2048, %s211, %s198, 256, 128, 8
        $region28: #{tpu_custom_call.1} parent=23 // pred_fallthru
          _
      $region24: #{tpu_custom_call.1} parent=5 // pred_fallthru
        _
      %p217 = scmp.le.s32.totalorder 1, %s16
      %p218 = scmp.lt.s32.totalorder %s16, 3
      %p219 = pnand %p217, %p218
      %p220 = pneg %p219
      // Predicated region
      $region29: #{tpu_custom_call.1} parent=5 // pred_check
        _
      $region30: #{tpu_custom_call.1} parent=5 // pred_check_branch
        %222 = sbr.rel (%p219) target = $region32
      $region31: #{tpu_custom_call.1} parent=5 // pred_region
        %s223 = ssub.s32 %s16, 1
        // Predicated region
        $region33: #{tpu_custom_call.1} parent=31 // pred_check
          %p224 = pneg %p63
        $region34: #{tpu_custom_call.1} parent=31 // pred_check_branch
          %226 = sbr.rel (%p224) target = $region36
        $region35: #{tpu_custom_call.1} parent=31 // pred_region
          %227 = dma.done [#allocation4], 128
        $region36: #{tpu_custom_call.1} parent=31 // pred_fallthru
          _
        %s228 = sand.u32 %s21, 1
        %s229 = scalar_lea.sflag [#allocation7], %s228
        %s230 = sand.u32 %s78, 1
        %s231 = smul.addr %s230, 128
        %s232 = scalar_lea.vmem [#allocation6], %s231
        // Predicated region
        $region37: #{tpu_custom_call.1} parent=31 // pred_check
          %p233 = pneg %p91
        $region38: #{tpu_custom_call.1} parent=31 // pred_check_branch
          %235 = sbr.rel (%p233) target = $region40
        $region39: #{tpu_custom_call.1} parent=31 // pred_region
          %236 = dma.done %s229, 2048
        $region40: #{tpu_custom_call.1} parent=31 // pred_fallthru
          _
        // Predicated region
        $region41: #{tpu_custom_call.1} parent=31 // pred_check
          %p237 = pneg %p117
        $region42: #{tpu_custom_call.1} parent=31 // pred_check_branch
          %239 = sbr.rel (%p237) target = $region44
        $region43: #{tpu_custom_call.1} parent=31 // pred_region
          %240 = dma.done [#allocation7], 2048
        $region44: #{tpu_custom_call.1} parent=31 // pred_fallthru
          _
        %p241 = pneg %p63
        %p242 = pneg %p60
        %s243 = sand.u32 %s21, 1
        %s244 = scalar_lea.sflag [#allocation7], %s243
        %s245 = sand.u32 %s78, 1
        %s246 = smul.addr %s245, 128
        %s247 = scalar_lea.vmem [#allocation6], %s246
        %p248 = pneg %p91
        %p249 = pneg %p88
        %p250 = pneg %p117
        %p251 = pneg %p114
        %p252 = pneg %p145
        %p253 = pneg %p142
        %s254 = sand.u32 %s132, 1
        %s255 = scalar_lea.sflag [#allocation5], %s254
        %s256 = sand.u32 %s132, 1
        %s257 = smul.addr %s256, 8
        %s258 = scalar_lea.vmem [#allocation9], %s257
        %s259 = smul.u32 16, %s28
        %s260 = smul.u32 16, %s28
        %p261 = scmp.eq.s32.totalorder %s28, 0
        // Predicated region
        $region45: #{tpu_custom_call.1} parent=31 // pred_check
          %p262 = pneg %p261
        $region46: #{tpu_custom_call.1} parent=31 // pred_check_branch
          %264 = sbr.rel (%p262) target = $region48
        $region47: #{tpu_custom_call.1} parent=31 // pred_region
          %265 = vst [vmem:[#allocation2] sm:$0xff] 0.0
        $region48: #{tpu_custom_call.1} parent=31 // pred_fallthru
          _
        %v266 = vld [vmem:[%s232] sm:$0xff]
        %v267 = vld [vmem:[%s232 + $0x8] sm:$0xff]
        %v268 = vld [vmem:[%s232 + $0x10] sm:$0xff]
        %v269 = vld [vmem:[%s232 + $0x18] sm:$0xff]
        %v270 = vld [vmem:[%s232 + $0x20] sm:$0xff]
        %v271 = vld [vmem:[%s232 + $0x28] sm:$0xff]
        %v272 = vld [vmem:[%s232 + $0x30] sm:$0xff]
        %v273 = vld [vmem:[%s232 + $0x38] sm:$0xff]
        %v274 = vld [vmem:[%s232 + $0x40] sm:$0xff]
        %v275 = vld [vmem:[%s232 + $0x48] sm:$0xff]
        %v276 = vld [vmem:[%s232 + $0x50] sm:$0xff]
        %v277 = vld [vmem:[%s232 + $0x58] sm:$0xff]
        %v278 = vld [vmem:[%s232 + $0x60] sm:$0xff]
        %v279 = vld [vmem:[%s232 + $0x68] sm:$0xff]
        %v280 = vld [vmem:[%s232 + $0x70] sm:$0xff]
        %v281 = vld [vmem:[%s232 + $0x78] sm:$0xff]
        %v282 = vld [vmem:[#allocation8] sm:$0xff]
        %v283 = vld [vmem:[#allocation8 + $0x8] sm:$0xff]
        %v284 = vld [vmem:[#allocation8 + $0x10] sm:$0xff]
        %v285 = vld [vmem:[#allocation8 + $0x18] sm:$0xff]
        %v286 = vld [vmem:[#allocation8 + $0x20] sm:$0xff]
        %v287 = vld [vmem:[#allocation8 + $0x28] sm:$0xff]
        %v288 = vld [vmem:[#allocation8 + $0x30] sm:$0xff]
        %v289 = vld [vmem:[#allocation8 + $0x38] sm:$0xff]
        %v290 = vld [vmem:[#allocation8 + $0x40] sm:$0xff]
        %v291 = vld [vmem:[#allocation8 + $0x48] sm:$0xff]
        %v292 = vld [vmem:[#allocation8 + $0x50] sm:$0xff]
        %v293 = vld [vmem:[#allocation8 + $0x58] sm:$0xff]
        %v294 = vld [vmem:[#allocation8 + $0x60] sm:$0xff]
        %v295 = vld [vmem:[#allocation8 + $0x68] sm:$0xff]
        %v296 = vld [vmem:[#allocation8 + $0x70] sm:$0xff]
        %v297 = vld [vmem:[#allocation8 + $0x78] sm:$0xff]
        %v298 = vmul.f32 %v266, %v282
        %v299 = vmul.f32 %v267, %v283
        %v300 = vmul.f32 %v268, %v284
        %v301 = vmul.f32 %v269, %v285
        %v302 = vmul.f32 %v270, %v286
        %v303 = vmul.f32 %v271, %v287
        %v304 = vmul.f32 %v272, %v288
        %v305 = vmul.f32 %v273, %v289
        %v306 = vmul.f32 %v274, %v290
        %v307 = vmul.f32 %v275, %v291
        %v308 = vmul.f32 %v276, %v292
        %v309 = vmul.f32 %v277, %v293
        %v310 = vmul.f32 %v278, %v294
        %v311 = vmul.f32 %v279, %v295
        %v312 = vmul.f32 %v280, %v296
        %v313 = vmul.f32 %v281, %v297
        %v314 = vld [vmem:[#allocation2] sm:$0xff]
        %v315 = vld [vmem:[#allocation3] sm:$0xff]
        %316 = vmatprep.subr.mxu0 0.0
        %317 = vmatpush1.msra.mxu0 %v298
        %318 = vmatprep.subr.mxu0 0.0
        %319 = vmatpush1.msra.mxu0 %v299
        %320 = vmatprep.subr.mxu0 0.0
        %321 = vmatpush1.msra.mxu0 %v300
        %322 = vmatprep.subr.mxu0 0.0
        %323 = vmatpush1.msra.mxu0 %v301
        %324 = vmatprep.subr.mxu0 0.0
        %325 = vmatpush1.msra.mxu0 %v302
        %326 = vmatprep.subr.mxu0 0.0
        %327 = vmatpush1.msra.mxu0 %v303
        %328 = vmatprep.subr.mxu0 0.0
        %329 = vmatpush1.msra.mxu0 %v304
        %330 = vmatprep.subr.mxu0 0.0
        %331 = vmatpush1.msra.mxu0 %v305
        %332 = vmatprep.subr.mxu0 0.0
        %333 = vmatpush1.msra.mxu0 %v306
        %334 = vmatprep.subr.mxu0 0.0
        %335 = vmatpush1.msra.mxu0 %v307
        %336 = vmatprep.subr.mxu0 0.0
        %337 = vmatpush1.msra.mxu0 %v308
        %338 = vmatprep.subr.mxu0 0.0
        %339 = vmatpush1.msra.mxu0 %v309
        %340 = vmatprep.subr.mxu0 0.0
        %341 = vmatpush1.msra.mxu0 %v310
        %342 = vmatprep.subr.mxu0 0.0
        %343 = vmatpush1.msra.mxu0 %v311
        %344 = vmatprep.subr.mxu0 0.0
        %345 = vmatpush1.msra.mxu0 %v312
        %346 = vmatprep.subr.mxu0 0.0
        %347 = vmatpush1.msra.mxu0 %v313
        %348 = vmatprep.subr.mxu0 0.0
        %349 = vmatpush1.msra.mxu0 0.0
        %350 = vmatprep.subr.mxu0 0.0
        %351 = vmatpush1.msra.mxu0 0.0
        %352 = vmatprep.subr.mxu0 0.0
        %353 = vmatpush1.msra.mxu0 0.0
        %354 = vmatprep.subr.mxu0 0.0
        %355 = vmatpush1.msra.mxu0 0.0
        %356 = vmatprep.subr.mxu0 0.0
        %357 = vmatpush1.msra.mxu0 0.0
        %358 = vmatprep.subr.mxu0 0.0
        %359 = vmatpush1.msra.mxu0 0.0
        %360 = vmatprep.subr.mxu0 0.0
        %361 = vmatpush1.msra.mxu0 0.0
        %362 = vmatprep.subr.mxu0 0.0
        %363 = vmatpush1.msra.mxu0 0.0
        %364 = vmatprep.subr.mxu0 0.0
        %365 = vmatpush1.msra.mxu0 0.0
        %366 = vmatprep.subr.mxu0 0.0
        %367 = vmatpush1.msra.mxu0 0.0
        %368 = vmatprep.subr.mxu0 0.0
        %369 = vmatpush1.msra.mxu0 0.0
        %370 = vmatprep.subr.mxu0 0.0
        %371 = vmatpush1.msra.mxu0 0.0
        %372 = vmatprep.subr.mxu0 0.0
        %373 = vmatpush1.msra.mxu0 0.0
        %374 = vmatprep.subr.mxu0 0.0
        %375 = vmatpush1.msra.mxu0 0.0
        %376 = vmatprep.subr.mxu0 0.0
        %377 = vmatpush1.msra.mxu0 0.0
        %378 = vmatprep.subr.mxu0 0.0
        %379 = vmatpush1.msra.mxu0 0.0
        %380 = vmatprep.mubr.f32.mxu0 0.0
        %381 = vmatmul.mubr.f32.gmra.mrb[0].mxu0 %v315
        %v382 = vpop.f32.mrb[0].mxu0
        %v383 = vadd.f32 0.0, %v382
        %v384 = vpop.f32.mrb[0].mxu0
        %385 = vdwg.mxu0
        %v386 = vadd.f32 %v314, %v383
        %387 = vst [vmem:[#allocation2] sm:$0xff] %v386
        // Predicated region
        $region49: #{tpu_custom_call.1} parent=31 // pred_check
          %p388 = pneg %p261
        $region50: #{tpu_custom_call.1} parent=31 // pred_check_branch
          %390 = sbr.rel (%p388) target = $region52
        $region51: #{tpu_custom_call.1} parent=31 // pred_region
          %v391 = vld [vmem:[#allocation2] sm:$0xff]
          %392 = vst [vmem:[%s258] sm:$0xff] %v391
        $region52: #{tpu_custom_call.1} parent=31 // pred_fallthru
          _
        %s393 = sand.u32 %s132, 1
        %s394 = scalar_lea.sflag [#allocation5], %s393
        %s395 = sand.u32 %s132, 1
        %s396 = smul.addr %s395, 8
        %s397 = scalar_lea.vmem [#allocation9], %s396
        // Predicated region
        $region53: #{tpu_custom_call.1} parent=31 // pred_check
          %p398 = pneg %p142
        $region54: #{tpu_custom_call.1} parent=31 // pred_check_branch
          %400 = sbr.rel (%p398) target = $region56
        $region55: #{tpu_custom_call.1} parent=31 // pred_region
          %s402 = ssub.s32 128, 128
          %403 = vsyncadd %s394, %s402
          %s404 = smul.addr %s26, 2
          %s405 = sadd.s32 %s27, %s404
          %s406 = smul.addr %s405, 128
          %s407 = scalar_lea.hbm %s3, %s406
          %s409 = sshll.u32 %s397, 4
          %s410 = int_to_ptr.vmem [resolvable:$true] %s409
          %412 = dma.vmem_to_hbm [thread:$0]  %s410, 128, %s407, %s394
        $region56: #{tpu_custom_call.1} parent=31 // pred_fallthru
          _
      $region32: #{tpu_custom_call.1} parent=5 // pred_fallthru
        _
      %p413 = scmp.le.s32.totalorder 2, %s16
      // Predicated region
      $region57: #{tpu_custom_call.1} parent=5 // pred_check
        %p414 = pneg %p413
      $region58: #{tpu_custom_call.1} parent=5 // pred_check_branch
        %416 = sbr.rel (%p414) target = $region60
      $region59: #{tpu_custom_call.1} parent=5 // pred_region
        %s417 = ssub.s32 %s16, 2
        // Predicated region
        $region61: #{tpu_custom_call.1} parent=59 // pred_check
          %p418 = pneg %p148
        $region62: #{tpu_custom_call.1} parent=59 // pred_check_branch
          %420 = sbr.rel (%p418) target = $region64
        $region63: #{tpu_custom_call.1} parent=59 // pred_region
          %s421 = sand.u32 %s133, 1
          %s422 = scalar_lea.sflag [#allocation5], %s421
          %s423 = sand.u32 %s133, 1
          %s424 = smul.addr %s423, 8
          %s425 = scalar_lea.vmem [#allocation9], %s424
          %426 = dma.done %s422, 128
        $region64: #{tpu_custom_call.1} parent=59 // pred_fallthru
          _
      $region60: #{tpu_custom_call.1} parent=5 // pred_fallthru
        _
    $region6: #{tpu_custom_call.1} parent=1 // loop_footer
      %s20 = sadd.s32 1, %s16
    $region7: #{tpu_custom_call.1} parent=1 // loop_footer_branch
      %15 = sbr.rel target = $region3
    $region8: #{tpu_custom_call.1} parent=1 // loop_exit
      _
    %427 = vsyncpa [#allocation4], 1
    %s428 = scalar_lea.sflag [#allocation4], 1
    %429 = vsyncpa %s428, 1
    %430 = vsyncpa [#allocation7], 1
    %s431 = scalar_lea.sflag [#allocation7], 1
    %432 = vsyncpa %s431, 1
    %433 = vsyncpa [#allocation5], 1
    %s434 = scalar_lea.sflag [#allocation5], 1
    %435 = vsyncpa %s434, 1

</llo_original>
